<compile_context>
chip_gen: v5e
topology: v5e:2x2
jax: 0.10.0
libtpu: 0.0.40
codegen_flags: <defaults>
</compile_context>

<pallas_src>
import functools

import jax
import jax.numpy as jnp
from jax.experimental import pallas as pl
from jax.experimental.pallas import tpu as pltpu

_LANES = 128


def _partial_loss_kernel(p_ref, u_ref, l_ref, out_ref, *, total_n):
    """Per-tile (1, 128) per-lane partial sums of log(sigmoid((u - p) * label))."""
    i = pl.program_id(0)
    tile_r, lanes = p_ref.shape
    tile_elems = tile_r * lanes

    # Cast inside the kernel (free on the VPU); wrapper keeps original dtype.
    p = p_ref[...].astype(jnp.float32)
    u = u_ref[...].astype(jnp.float32)
    lab = l_ref[...].astype(jnp.float32)

    z = (u - p) * lab
    # Numerically-stable log(sigmoid(z)) = min(z, 0) - log1p(exp(-|z|)).
    log_sig = jnp.minimum(z, 0.0) - jnp.log1p(jnp.exp(-jnp.abs(z)))

    # Only the boundary tile needs masking; keep it off the hot path.
    needs_mask = (i + 1) * tile_elems > total_n

    @pl.when(jnp.logical_not(needs_mask))
    def _():
        # Interior tile: plain sublane reduction, lane-dense unmasked store.
        out_ref[...] = jnp.sum(log_sig, axis=0, keepdims=True)

    @pl.when(needs_mask)
    def _():
        # Boundary tile: mask out padded / OOB elements with a select (safe
        # even if log_sig is NaN/Inf in the unspecified ragged-block rows).
        remaining = total_n - i * tile_elems  # 0 < remaining <= tile_elems
        row = jax.lax.broadcasted_iota(jnp.int32, (tile_r, lanes), 0)
        lane = jax.lax.broadcasted_iota(jnp.int32, (tile_r, lanes), 1)
        local = row * lanes + lane
        masked = jnp.where(local < remaining, log_sig, 0.0)
        out_ref[...] = jnp.sum(masked, axis=0, keepdims=True)


def custom_loss(score_hypo_premise, score_hypo_update, labels, *, tile_rows=2048):
    """Pallas implementation of CustomLoss.forward (reduction='mean')."""
    assert score_hypo_premise.shape == score_hypo_update.shape == labels.shape
    n = int(score_hypo_premise.size)
    assert n > 0
    # In-kernel index arithmetic is int32; guard against overflow.
    assert n < 2**31 - tile_rows * _LANES, "input too large for int32 index math"

    rows_needed = pl.cdiv(n, _LANES)
    # Multiple of 8, capped at tile_rows, and small enough that the parallel
    # grid axis has >= 2 steps when there is enough work (v7x has 2 TCs).
    tile_r = max(8, min(tile_rows, 8 * pl.cdiv(rows_needed, 2 * 8)))
    num_tiles = pl.cdiv(rows_needed, tile_r)
    pad = rows_needed * _LANES - n  # <= 127 elements

    def to_slab(x):
        # Keep original dtype (no wrapper upcast) -> minimal HBM traffic.
        x = jnp.ravel(x)
        if pad:
            x = jnp.pad(x, (0, pad))
        return x.reshape(rows_needed, _LANES)

    p2, u2, l2 = (
        to_slab(score_hypo_premise),
        to_slab(score_hypo_update),
        to_slab(labels),
    )

    kernel = functools.partial(_partial_loss_kernel, total_n=n)
    partials = pl.pallas_call(
        kernel,
        out_shape=jax.ShapeDtypeStruct((1, num_tiles * _LANES), jnp.float32),
        grid_spec=pl.GridSpec(
            grid=(num_tiles,),
            in_specs=[
                pl.BlockSpec((tile_r, _LANES), lambda i: (i, 0)),
                pl.BlockSpec((tile_r, _LANES), lambda i: (i, 0)),
                pl.BlockSpec((tile_r, _LANES), lambda i: (i, 0)),
            ],
            out_specs=pl.BlockSpec((1, _LANES), lambda i: (0, i)),
        ),
        compiler_params=pltpu.CompilerParams(
            dimension_semantics=("parallel",),
            # Let XLA fuse the (tiny) pad/reshape producers into the
            # pallas_call inputs instead of materializing copies in HBM.
            allow_input_fusion=[True, True, True],
        ),
    )(p2, u2, l2)

    # Final cross-lane + cross-tile reduce, negate, divide by the TRUE count.
    return -(jnp.sum(partials) / jnp.float32(n))


def _reference_loss(p, u, labels):
    # Pure-JAX reference mirroring the PyTorch code exactly.
    outputs = (u - p).reshape(-1).astype(jnp.float32)
    lab = labels.reshape(-1).astype(jnp.float32)
    return -jnp.mean(jnp.log(jax.nn.sigmoid(outputs * lab)))


if __name__ == "__main__":
    key = jax.random.PRNGKey(0)
    k1, k2, k3 = jax.random.split(key, 3)

    batch, seq = 4, 8  # small shapes; forward only requires matching shapes
    score_hypo_premise = jax.random.normal(k1, (batch, seq), dtype=jnp.float32)
    score_hypo_update = jax.random.normal(k2, (batch, seq), dtype=jnp.float32)
    # labels in {-1, +1}, as used by this ranking loss
    labels = jnp.where(
        jax.random.bernoulli(k3, 0.5, (batch, seq)), 1.0, -1.0
    ).astype(jnp.float32)

    loss = custom_loss(score_hypo_premise, score_hypo_update, labels)
    jax.block_until_ready(loss)

    ref = _reference_loss(score_hypo_premise, score_hypo_update, labels)
    assert jnp.allclose(loss, ref, rtol=1e-5, atol=1e-5), (loss, ref)

    print("KERNEL_OK")
</pallas_src>

<mosaic_0001>
module attributes {stable_mosaic.version = 11 : i64} {
  func.func @_partial_loss_kernel(%arg0: i32, %arg1: memref<8x128xf32, #tpu.memory_space<vmem>>, %arg2: memref<8x128xf32, #tpu.memory_space<vmem>>, %arg3: memref<8x128xf32, #tpu.memory_space<vmem>>, %arg4: memref<1x128xf32, #tpu.memory_space<vmem>>) attributes {dimension_semantics = [#tpu.dimension_semantics<parallel>], iteration_bounds = array<i64: 1>, scalar_prefetch = 0 : i64, scratch_operands = 0 : i64, tpu.core_type = #tpu.core_type<tc>, window_params = [{transform_indices = @transform_0, window_bounds = array<i64: 8, 128>}, {transform_indices = @transform_1, window_bounds = array<i64: 8, 128>}, {transform_indices = @transform_2, window_bounds = array<i64: 8, 128>}, {transform_indices = @transform_3, window_bounds = array<i64: 1, 128>}]} {
    %c0 = arith.constant 0 : index
    %c0_0 = arith.constant 0 : index
    %0 = vector.load %arg1[%c0, %c0_0] : memref<8x128xf32, #tpu.memory_space<vmem>>, vector<8x128xf32>
    %c0_1 = arith.constant 0 : index
    %c0_2 = arith.constant 0 : index
    %1 = vector.load %arg2[%c0_1, %c0_2] : memref<8x128xf32, #tpu.memory_space<vmem>>, vector<8x128xf32>
    %c0_3 = arith.constant 0 : index
    %c0_4 = arith.constant 0 : index
    %2 = vector.load %arg3[%c0_3, %c0_4] : memref<8x128xf32, #tpu.memory_space<vmem>>, vector<8x128xf32>
    %3 = arith.subf %1, %0 : vector<8x128xf32>
    %4 = arith.mulf %3, %2 : vector<8x128xf32>
    %cst = arith.constant 0.000000e+00 : f32
    %5 = vector.broadcast %cst : f32 to vector<8x128xf32>
    %6 = arith.minimumf %4, %5 : vector<8x128xf32>
    %7 = math.absf %4 : vector<8x128xf32>
    %cst_5 = arith.constant 0.000000e+00 : f32
    %8 = vector.broadcast %cst_5 : f32 to vector<8x128xf32>
    %9 = arith.subf %8, %7 : vector<8x128xf32>
    %10 = math.exp %9 : vector<8x128xf32>
    %11 = math.log1p %10 : vector<8x128xf32>
    %12 = arith.subf %6, %11 : vector<8x128xf32>
    %c1_i32 = arith.constant 1 : i32
    %13 = arith.addi %arg0, %c1_i32 : i32
    %c1024_i32 = arith.constant 1024 : i32
    %14 = arith.muli %13, %c1024_i32 : i32
    %c32_i32 = arith.constant 32 : i32
    %15 = arith.cmpi sgt, %14, %c32_i32 : i32
    %true = arith.constant true
    %16 = arith.xori %15, %true : i1
    %17 = arith.extui %16 : i1 to i32
    %c0_i32 = arith.constant 0 : i32
    %18 = arith.cmpi ne, %17, %c0_i32 : i32
    scf.if %18 {
      %cst_7 = arith.constant dense<0.000000e+00> : vector<128xf32>
      %21 = vector.multi_reduction <add>, %12, %cst_7 [0] : vector<8x128xf32> to vector<128xf32>
      %22 = vector.shape_cast %21 : vector<128xf32> to vector<1x128xf32>
      %c0_8 = arith.constant 0 : index
      %c0_9 = arith.constant 0 : index
      %23 = vector.load %arg4[%c0_8, %c0_9] : memref<1x128xf32, #tpu.memory_space<vmem>>, vector<1x128xf32>
      tpu.vector_store %arg4[%c0_8, %c0_9], %22 {strides = array<i32>} : memref<1x128xf32, #tpu.memory_space<vmem>>, vector<1x128xf32>,
    } else {
    }
    %19 = arith.extui %15 : i1 to i32
    %c0_i32_6 = arith.constant 0 : i32
    %20 = arith.cmpi ne, %19, %c0_i32_6 : i32
    scf.if %20 {
      %c1024_i32_7 = arith.constant 1024 : i32
      %21 = arith.muli %arg0, %c1024_i32_7 : i32
      %c32_i32_8 = arith.constant 32 : i32
      %22 = arith.subi %c32_i32_8, %21 : i32
      %23 = tpu.iota {dimensions = array<i32: 0>} : vector<8x128xi32>
      %24 = tpu.iota {dimensions = array<i32: 1>} : vector<8x128xi32>
      %c128_i32 = arith.constant 128 : i32
      %25 = vector.broadcast %c128_i32 : i32 to vector<8x128xi32>
      %26 = arith.muli %23, %25 : vector<8x128xi32>
      %27 = arith.addi %26, %24 : vector<8x128xi32>
      %28 = vector.broadcast %22 : i32 to vector<8x128xi32>
      %29 = arith.cmpi slt, %27, %28 : vector<8x128xi32>
      %cst_9 = arith.constant 0.000000e+00 : f32
      %30 = vector.broadcast %cst_9 : f32 to vector<8x128xf32>
      %31 = arith.select %29, %12, %30 : vector<8x128xi1>, vector<8x128xf32>
      %cst_10 = arith.constant dense<0.000000e+00> : vector<128xf32>
      %32 = vector.multi_reduction <add>, %31, %cst_10 [0] : vector<8x128xf32> to vector<128xf32>
      %33 = vector.shape_cast %32 : vector<128xf32> to vector<1x128xf32>
      %c0_11 = arith.constant 0 : index
      %c0_12 = arith.constant 0 : index
      %34 = vector.load %arg4[%c0_11, %c0_12] : memref<1x128xf32, #tpu.memory_space<vmem>>, vector<1x128xf32>
      tpu.vector_store %arg4[%c0_11, %c0_12], %33 {strides = array<i32>} : memref<1x128xf32, #tpu.memory_space<vmem>>, vector<1x128xf32>,
    } else {
    }
    return
  }
  func.func @transform_0(%arg0: i32) -> (i32, i32) {
    %c0_i32 = arith.constant 0 : i32
    %c0_i32_0 = arith.constant 0 : i32
    return %arg0, %c0_i32 : i32, i32
  }
  func.func @transform_1(%arg0: i32) -> (i32, i32) {
    %c0_i32 = arith.constant 0 : i32
    %c0_i32_0 = arith.constant 0 : i32
    return %arg0, %c0_i32 : i32, i32
  }
  func.func @transform_2(%arg0: i32) -> (i32, i32) {
    %c0_i32 = arith.constant 0 : i32
    %c0_i32_0 = arith.constant 0 : i32
    return %arg0, %c0_i32 : i32, i32
  }
  func.func @transform_3(%arg0: i32) -> (i32, i32) {
    %c0_i32 = arith.constant 0 : i32
    %c0_i32_0 = arith.constant 0 : i32
    return %c0_i32, %arg0 : i32, i32
  }
}

</mosaic_0001>

<llo_original>
// kernel: tpu_custom_call.1
$region0: #{tpu_custom_call.1}
  #allocation0 [shape = 'u32[]', space=smem, size = 0x4, offset = 0x4, fixed_abs, tag = 'smem constant byte address 0x4 - core index']
  #allocation1 [shape = 'u32[72,128]{1,0:T(1,128)}', space=vmem, size = 0x9000, scoped, tag = 'internal scratch']
  %s0 = inlined_call_operand.hbm [shape: f32[1,128], index: 0, kind: input, shape index: {}]
  %s1 = inlined_call_operand.hbm [shape: f32[1,128], index: 1, kind: input, shape index: {}]
  %s2 = inlined_call_operand.vmem [shape: f32[1,128], index: 2, kind: input, shape index: {}]
  %s3 = inlined_call_operand.hbm [shape: f32[1,128], index: 3, kind: output, shape index: {}]
  %s4 = sld [smem:[#allocation0]]
  $region38: #{tpu_custom_call.1} parent=0
    _
  %s6 = ssub.s32 1, %s4
  %s7 = scalar_select 0, %s6, %s4
  $region1: #{tpu_custom_call.1} parent=0
    #allocation2 [shape = 'u8[4096]{0}', space=vmem, size = 0x1000, scoped, tag = 'input window, operand 0, single buffered']
    #allocation3 [shape = 's32[1]{0}', space=sflag, size = 0x4, scoped, tag = 'scoped memory for tpu_custom_call.1']
    #allocation4 [shape = 's32[1]{0}', space=sflag, size = 0x4, scoped, tag = 'scoped memory for tpu_custom_call.1']
    #allocation5 [shape = 'u8[4096]{0}', space=vmem, size = 0x1000, scoped, tag = 'input window, operand 1, single buffered']
    #allocation6 [shape = 's32[1]{0}', space=sflag, size = 0x4, scoped, tag = 'scoped memory for tpu_custom_call.1']
    #allocation7 [shape = 'u8[512]{0}', space=vmem, size = 0x400, scoped, tag = 'output window, operand 0, single buffered']
    %8 = vsyncpa [#allocation3], 0
    %9 = vsyncpa [#allocation6], 0
    %10 = vsyncpa [#allocation4], 0
    // Predicated region
    $region2: #{tpu_custom_call.1} parent=1 // pred_check
      _
    $region3: #{tpu_custom_call.1} parent=1 // pred_check_branch
      %12 = sbr.rel (0) target = $region5
    $region4: #{tpu_custom_call.1} parent=1 // pred_region
      %14 = vsyncadd [#allocation3], 112
      %s15 = sshll.u32 %s0, 4
      %s16 = int_to_ptr.hbm [resolvable:$true] %s15
      %s17 = sshll.u32 [#allocation2], 4
      %s18 = int_to_ptr.vmem [resolvable:$true] %s17
      %23 = dma.hbm_to_vmem [thread:$0]  %s16, 16, %s18, [#allocation3], 16, 16, 1
    $region5: #{tpu_custom_call.1} parent=1 // pred_fallthru
      _
    // Predicated region
    $region6: #{tpu_custom_call.1} parent=1 // pred_check
      _
    $region7: #{tpu_custom_call.1} parent=1 // pred_check_branch
      %25 = sbr.rel (0) target = $region9
    $region8: #{tpu_custom_call.1} parent=1 // pred_region
      %27 = vsyncadd [#allocation6], 112
      %s28 = sshll.u32 %s1, 4
      %s29 = int_to_ptr.hbm [resolvable:$true] %s28
      %s30 = sshll.u32 [#allocation5], 4
      %s31 = int_to_ptr.vmem [resolvable:$true] %s30
      %36 = dma.hbm_to_vmem [thread:$0]  %s29, 16, %s31, [#allocation6], 16, 16, 1
    $region9: #{tpu_custom_call.1} parent=1 // pred_fallthru
      _
    // Predicated region
    $region10: #{tpu_custom_call.1} parent=1 // pred_check
      _
    $region11: #{tpu_custom_call.1} parent=1 // pred_check_branch
      %38 = sbr.rel (0) target = $region13
    $region12: #{tpu_custom_call.1} parent=1 // pred_region
      _
    $region13: #{tpu_custom_call.1} parent=1 // pred_fallthru
      _
    // Predicated region
    $region14: #{tpu_custom_call.1} parent=1 // pred_check
      _
    $region15: #{tpu_custom_call.1} parent=1 // pred_check_branch
      %40 = sbr.rel (0) target = $region17
    $region16: #{tpu_custom_call.1} parent=1 // pred_region
      %42 = dma.done [#allocation3], 128
    $region17: #{tpu_custom_call.1} parent=1 // pred_fallthru
      _
    // Predicated region
    $region18: #{tpu_custom_call.1} parent=1 // pred_check
      _
    $region19: #{tpu_custom_call.1} parent=1 // pred_check_branch
      %44 = sbr.rel (0) target = $region21
    $region20: #{tpu_custom_call.1} parent=1 // pred_region
      %46 = dma.done [#allocation6], 128
    $region21: #{tpu_custom_call.1} parent=1 // pred_fallthru
      _
    %v47 = vld [vmem:[#allocation2] sm:$0xff]
    %v48 = vld [vmem:[#allocation5] sm:$0xff]
    %v49 = vld [vmem:[%s2] sm:$0xff]
    %v50 = vsub.f32 %v48, %v47
    %v51 = vmul.f32 %v50, %v49
    %v52 = vmin.f32 %v51, 0.0
    %v53 = vand.u32 2147483647, %v51
    %v54 = vsub.f32 0.0, %v53
    %v55 = vmul.f32 %v54, 1.442695
    %v56 = vpow.pop %v55
    %v57 = vadd.f32 %v56, 1.0
    %v58 = vlog2.pop %v57
    %v59 = vmul.f32 %v58, 0.6931472
    %v60 = vmul.f32 -0.5, %v56
    %v61 = vadd.f32 %v60, 1.0
    %v62 = vmul.f32 %v61, %v56
    %v63 = vand.u32 2147483647, %v56
    %vm64 = vcmp.lt.f32.partialorder %v63, 0.0004427343
    %v65 = vsel %vm64, %v62, %v59
    %v66 = vsub.f32 %v52, %v65
    %s67 = sadd.s32 0, 1
    %s68 = smul.u32 %s67, 1024
    %p69 = scmp.gt.s32.totalorder %s68, 32
    %p70 = scmp.le.s32.totalorder %s68, 32
    // Predicated region
    $region22: #{tpu_custom_call.1} parent=1 // pred_check
      %p71 = pneg %p70
    $region23: #{tpu_custom_call.1} parent=1 // pred_check_branch
      %73 = sbr.rel (%p71) target = $region25
    $region24: #{tpu_custom_call.1} parent=1 // pred_region
      %v74 = vrot.slane %v66, 4
      %v75 = vadd.f32 %v66, %v74
      %v76 = vrot.slane %v75, 2
      %v77 = vadd.f32 %v75, %v76
      %v78 = vrot.slane %v77, 1
      %v79 = vadd.f32 %v77, %v78
      %80 = vst [vmem:[#allocation7] sm:$0x1] %v79
    $region25: #{tpu_custom_call.1} parent=1 // pred_fallthru
      _
    // Predicated region
    $region26: #{tpu_custom_call.1} parent=1 // pred_check
      %p81 = pneg %p69
    $region27: #{tpu_custom_call.1} parent=1 // pred_check_branch
      %83 = sbr.rel (%p81) target = $region29
    $region28: #{tpu_custom_call.1} parent=1 // pred_region
      %s84 = smul.u32 0, 1024
      %s85 = ssub.s32 32, %s84
      %v86 = vlaneseq
      %v87 = vshrl.u32 %v86, 7
      %v88 = vlaneseq
      %v89 = vand.u32 %v88, 127
      %v90 = vmul.u32 %v87, 128
      %v91 = vadd.s32 %v90, %v89
      %v92 = vstv %s85
      %vm93 = vcmp.lt.s32.totalorder %v91, %v92
      %v94 = vsel %vm93, %v66, 0.0
      %v95 = vrot.slane %v94, 4
      %v96 = vadd.f32 %v94, %v95
      %v97 = vrot.slane %v96, 2
      %v98 = vadd.f32 %v96, %v97
      %v99 = vrot.slane %v98, 1
      %v100 = vadd.f32 %v98, %v99
      %101 = vst [vmem:[#allocation7] sm:$0x1] %v100
    $region29: #{tpu_custom_call.1} parent=1 // pred_fallthru
      _
    // Predicated region
    $region30: #{tpu_custom_call.1} parent=1 // pred_check
      _
    $region31: #{tpu_custom_call.1} parent=1 // pred_check_branch
      %103 = sbr.rel (0) target = $region33
    $region32: #{tpu_custom_call.1} parent=1 // pred_region
      %105 = vsyncadd [#allocation4], 0
      %s107 = sshll.u32 [#allocation7], 4
      %s108 = int_to_ptr.vmem [resolvable:$true] %s107
      %s109 = sshll.u32 %s3, 4
      %s110 = int_to_ptr.hbm [resolvable:$true] %s109
      %112 = dma.vmem_to_hbm [thread:$0]  %s108, 16, %s110, [#allocation4]
    $region33: #{tpu_custom_call.1} parent=1 // pred_fallthru
      _
    // Predicated region
    $region34: #{tpu_custom_call.1} parent=1 // pred_check
      _
    $region35: #{tpu_custom_call.1} parent=1 // pred_check_branch
      %114 = sbr.rel (0) target = $region37
    $region36: #{tpu_custom_call.1} parent=1 // pred_region
      %116 = dma.done [#allocation4], 16
    $region37: #{tpu_custom_call.1} parent=1 // pred_fallthru
      _
    %117 = vsyncpa [#allocation3], 1
    %118 = vsyncpa [#allocation6], 1
    %119 = vsyncpa [#allocation4], 1

</llo_original>
